<compile_context>
chip_gen: v7x
topology: tpu7x:2x2x1
jax: 0.10.0
libtpu: 0.0.40
codegen_flags: <defaults>
</compile_context>

<pallas_src>
import functools

import jax
import jax.numpy as jnp
from jax import lax
from jax.experimental import pallas as pl
from jax.experimental.pallas import tpu as pltpu

HIDDEN = 256
BN_EPS = 1e-5
LANE = 128
SUBLANE = 8


def _round_up(n, m):
    return ((n + m - 1) // m) * m


def _confidnet_kernel(x_ref, tgt_ref,
                      w1_ref, b1_ref, w2_ref, b2_ref,
                      w3_ref, b3_ref, w4_ref, b4_ref,
                      out_ref, sse_ref,
                      *, tb, n_rows, n_cols):
    # Linear -> ReLU (x3) -> Linear.  BN(eval) folded into next-layer weights
    # in the wrapper; Dropout is identity in eval mode.
    x = x_ref[...].astype(jnp.bfloat16)                                   # (tb, d_in)
    h = jnp.dot(x, w1_ref[...], preferred_element_type=jnp.float32) + b1_ref[...]
    h = jnp.maximum(h.astype(jnp.bfloat16), 0)                            # ReLU on bf16
    h = jnp.dot(h, w2_ref[...], preferred_element_type=jnp.float32) + b2_ref[...]
    h = jnp.maximum(h.astype(jnp.bfloat16), 0)
    h = jnp.dot(h, w3_ref[...], preferred_element_type=jnp.float32) + b3_ref[...]
    h = jnp.maximum(h.astype(jnp.bfloat16), 0)
    logits_pad = jnp.dot(h, w4_ref[...],
                         preferred_element_type=jnp.float32) + b4_ref[...]  # (tb, n_pad)
    logits = logits_pad[:, :n_cols]                                       # (tb, num_classes)
    out_ref[...] = logits                                                 # narrow store: only real bytes

    # Per-tile MSE partial: row-masked sum of squared error (edge-tile rows
    # beyond B carry garbage and are excluded here; their output writes are
    # dropped by Pallas edge-block handling).
    row = pl.program_id(0) * tb + lax.broadcasted_iota(jnp.int32, (tb, n_cols), 0)
    diff = jnp.where(row < n_rows, logits - tgt_ref[...], 0.0)
    sse = jnp.sum(diff * diff)
    # Scalar replicated over a constraint-safe (8,128) block; wrapper divides
    # by the block element count (derived from shape) and by B*num_classes.
    sse_ref[...] = jnp.full(sse_ref.shape, sse, dtype=jnp.float32)


def confidnet4layers_forward(x, targets, params, *, tb_max=2048):
    """Fused MLP + MSE-loss Pallas kernel. Returns (loss, output)."""
    B, d_in = x.shape
    num_classes = params["w4"].shape[1]
    n_pad = _round_up(max(num_classes, 1), LANE)

    # Batch tile: large enough to amortize per-step overhead, but split so a
    # v7x megacore gets >=2 grid steps when the batch allows it.
    tb = min(tb_max, _round_up(B, SUBLANE))
    if B > SUBLANE:
        tb = min(tb, _round_up(pl.cdiv(B, 2), SUBLANE))
    n_tiles = pl.cdiv(B, tb)

    # Fold eval-mode BatchNorm1d (per-feature scale/shift after ReLU) into the
    # NEXT Linear:  (h*s + t) @ W + b  ==  h @ (s[:,None]*W) + (t @ W + b).
    def bn_fold(gamma, beta, rm, rv):
        inv = gamma * lax.rsqrt(rv + BN_EPS)
        return inv, beta - rm * inv

    s1, t1 = bn_fold(params["g1"], params["be1"], params["rm1"], params["rv1"])
    s2, t2 = bn_fold(params["g2"], params["be2"], params["rm2"], params["rv2"])
    s3, t3 = bn_fold(params["g3"], params["be3"], params["rm3"], params["rv3"])

    w1 = params["w1"]                                   # (d_in, 256), no padding needed
    b1 = params["b1"]
    w2 = s1[:, None] * params["w2"]
    b2 = params["b2"] + t1 @ params["w2"]
    w3 = s2[:, None] * params["w3"]
    b3 = params["b3"] + t2 @ params["w3"]
    # Only w4/b4 are lane-padded (tiny, VMEM-resident); valid cols sliced in-kernel.
    w4 = jnp.zeros((HIDDEN, n_pad), jnp.float32).at[:, :num_classes].set(
        s3[:, None] * params["w4"])
    b4 = jnp.zeros((n_pad,), jnp.float32).at[:num_classes].set(
        params["b4"] + t3 @ params["w4"])

    # bf16 weights for full-rate MXU; accumulation stays f32 in-kernel.
    w1, w2, w3, w4 = (w.astype(jnp.bfloat16) for w in (w1, w2, w3, w4))

    kernel = functools.partial(_confidnet_kernel, tb=tb, n_rows=B, n_cols=num_classes)
    resident = lambda i: (0, 0)   # weights/biases stay in VMEM across grid steps

    out, sse = pl.pallas_call(
        kernel,
        grid=(n_tiles,),
        in_specs=[
            pl.BlockSpec((tb, d_in), lambda i: (i, 0)),         # x tile (unpadded)
            pl.BlockSpec((tb, num_classes), lambda i: (i, 0)),  # targets tile (unpadded)
            pl.BlockSpec((d_in, HIDDEN), resident),             # w1 (bf16)
            pl.BlockSpec((1, HIDDEN), resident),                # b1
            pl.BlockSpec((HIDDEN, HIDDEN), resident),           # w2 (BN1 folded)
            pl.BlockSpec((1, HIDDEN), resident),                # b2
            pl.BlockSpec((HIDDEN, HIDDEN), resident),           # w3 (BN2 folded)
            pl.BlockSpec((1, HIDDEN), resident),                # b3
            pl.BlockSpec((HIDDEN, n_pad), resident),            # w4 (BN3 folded, N-padded)
            pl.BlockSpec((1, n_pad), resident),                 # b4
        ],
        out_specs=(
            pl.BlockSpec((tb, num_classes), lambda i: (i, 0)),  # logits (unpadded)
            pl.BlockSpec((SUBLANE, LANE), lambda i: (i, 0)),    # per-tile SSE block
        ),
        out_shape=(
            jax.ShapeDtypeStruct((B, num_classes), jnp.float32),
            jax.ShapeDtypeStruct((n_tiles * SUBLANE, LANE), jnp.float32),
        ),
        compiler_params=pltpu.CompilerParams(
            dimension_semantics=("parallel",),
            vmem_limit_bytes=32 * 1024 * 1024),
    )(
        x, targets,
        w1, b1[None, :], w2, b2[None, :], w3, b3[None, :], w4, b4[None, :],
    )

    # Each per-tile SSE block holds one scalar replicated over the block; derive
    # the replication factor from the returned shape (robust to block changes).
    tile_elems = (sse.shape[0] // n_tiles) * sse.shape[1]
    loss = jnp.sum(sse) / (tile_elems * B * num_classes)
    return loss, out


def init_params(key, input_dims, num_classes=1):
    """nn.Linear default init (uniform +-1/sqrt(fan_in)); weights stored (in, out)."""
    dims = [(input_dims, HIDDEN), (HIDDEN, HIDDEN), (HIDDEN, HIDDEN), (HIDDEN, num_classes)]
    params = {}
    keys = jax.random.split(key, 2 * len(dims))
    for i, (fan_in, fan_out) in enumerate(dims):
        bound = 1.0 / jnp.sqrt(jnp.float32(fan_in))
        params[f"w{i+1}"] = jax.random.uniform(
            keys[2 * i], (fan_in, fan_out), jnp.float32, -bound, bound)
        params[f"b{i+1}"] = jax.random.uniform(
            keys[2 * i + 1], (fan_out,), jnp.float32, -bound, bound)
    # BatchNorm1d(256) parameters / running stats at PyTorch defaults.
    for i in (1, 2, 3):
        params[f"g{i}"] = jnp.ones((HIDDEN,), jnp.float32)     # gamma
        params[f"be{i}"] = jnp.zeros((HIDDEN,), jnp.float32)   # beta
        params[f"rm{i}"] = jnp.zeros((HIDDEN,), jnp.float32)   # running_mean
        params[f"rv{i}"] = jnp.ones((HIDDEN,), jnp.float32)    # running_var
    return params


def _ref_forward(x, targets, p):
    """Pure-JAX f32 reference (eval-mode BN, identity dropout)."""
    def bn(h, i):
        inv = p[f"g{i}"] / jnp.sqrt(p[f"rv{i}"] + BN_EPS)
        return (h - p[f"rm{i}"]) * inv + p[f"be{i}"]
    h = bn(jnp.maximum(x @ p["w1"] + p["b1"], 0.0), 1)
    h = bn(jnp.maximum(h @ p["w2"] + p["b2"], 0.0), 2)
    h = bn(jnp.maximum(h @ p["w3"] + p["b3"], 0.0), 3)
    out = h @ p["w4"] + p["b4"]
    return jnp.mean((out - targets) ** 2), out


if __name__ == "__main__":
    B, input_dims, num_classes = 8, 32, 1

    key = jax.random.PRNGKey(0)
    k_params, k_x, k_t = jax.random.split(key, 3)

    params = init_params(k_params, input_dims, num_classes)
    x = jax.random.normal(k_x, (B, input_dims), jnp.float32)
    targets = jax.random.uniform(k_t, (B, num_classes), jnp.float32)

    loss, out = jax.jit(confidnet4layers_forward)(x, targets, params)
    jax.block_until_ready((loss, out))

    assert out.shape == (B, num_classes)
    assert loss.shape == ()

    # Sanity check vs pure-JAX f32 reference (relaxed tolerance: bf16 matmuls).
    ref_loss, ref_out = _ref_forward(x, targets, params)
    assert jnp.allclose(out, ref_out, atol=1e-1, rtol=1e-1)
    assert jnp.allclose(loss, ref_loss, atol=1e-1, rtol=1e-1)

    print("KERNEL_OK")
</pallas_src>

<mosaic_0001>
module attributes {stable_mosaic.version = 11 : i64} {
  func.func @_confidnet_kernel(%arg0: i32, %arg1: memref<8x32xf32, #tpu.memory_space<vmem>>, %arg2: memref<8x1xf32, #tpu.memory_space<vmem>>, %arg3: memref<32x256xbf16, #tpu.memory_space<vmem>>, %arg4: memref<1x256xf32, #tpu.memory_space<vmem>>, %arg5: memref<256x256xbf16, #tpu.memory_space<vmem>>, %arg6: memref<1x256xf32, #tpu.memory_space<vmem>>, %arg7: memref<256x256xbf16, #tpu.memory_space<vmem>>, %arg8: memref<1x256xf32, #tpu.memory_space<vmem>>, %arg9: memref<256x128xbf16, #tpu.memory_space<vmem>>, %arg10: memref<1x128xf32, #tpu.memory_space<vmem>>, %arg11: memref<8x1xf32, #tpu.memory_space<vmem>>, %arg12: memref<8x128xf32, #tpu.memory_space<vmem>>) attributes {dimension_semantics = [#tpu.dimension_semantics<parallel>], iteration_bounds = array<i64: 1>, scalar_prefetch = 0 : i64, scratch_operands = 0 : i64, tpu.core_type = #tpu.core_type<tc>, window_params = [{transform_indices = @transform_0, window_bounds = array<i64: 8, 32>}, {transform_indices = @transform_1, window_bounds = array<i64: 8, 1>}, {pipeline_mode = #tpu.pipeline_mode<synchronous>, transform_indices = @transform_2, window_bounds = array<i64: 32, 256>}, {pipeline_mode = #tpu.pipeline_mode<synchronous>, transform_indices = @transform_3, window_bounds = array<i64: 1, 256>}, {pipeline_mode = #tpu.pipeline_mode<synchronous>, transform_indices = @transform_4, window_bounds = array<i64: 256, 256>}, {pipeline_mode = #tpu.pipeline_mode<synchronous>, transform_indices = @transform_5, window_bounds = array<i64: 1, 256>}, {pipeline_mode = #tpu.pipeline_mode<synchronous>, transform_indices = @transform_6, window_bounds = array<i64: 256, 256>}, {pipeline_mode = #tpu.pipeline_mode<synchronous>, transform_indices = @transform_7, window_bounds = array<i64: 1, 256>}, {pipeline_mode = #tpu.pipeline_mode<synchronous>, transform_indices = @transform_8, window_bounds = array<i64: 256, 128>}, {pipeline_mode = #tpu.pipeline_mode<synchronous>, transform_indices = @transform_9, window_bounds = array<i64: 1, 128>}, {transform_indices = @transform_10, window_bounds = array<i64: 8, 1>}, {transform_indices = @transform_11, window_bounds = array<i64: 8, 128>}]} {
    %c0 = arith.constant 0 : index
    %c0_0 = arith.constant 0 : index
    %0 = vector.load %arg1[%c0, %c0_0] : memref<8x32xf32, #tpu.memory_space<vmem>>, vector<8x32xf32>
    %1 = arith.truncf %0 : vector<8x32xf32> to vector<8x32xbf16>
    %c0_1 = arith.constant 0 : index
    %c0_2 = arith.constant 0 : index
    %2 = vector.load %arg3[%c0_1, %c0_2] : memref<32x256xbf16, #tpu.memory_space<vmem>>, vector<32x256xbf16>
    %cst = arith.constant dense<0.000000e+00> : vector<8x256xf32>
    %3 = tpu.matmul %1, %2, %cst {dimension_numbers = #tpu.dot_dimension_numbers<[1], [0], [0], [1], [0, 0, 1, 1], [], []>} : vector<8x32xbf16>, vector<32x256xbf16>, vector<8x256xf32> -> vector<8x256xf32>
    %c0_3 = arith.constant 0 : index
    %c0_4 = arith.constant 0 : index
    %4 = vector.load %arg4[%c0_3, %c0_4] : memref<1x256xf32, #tpu.memory_space<vmem>>, vector<1x256xf32>
    %5 = vector.broadcast %4 : vector<1x256xf32> to vector<8x256xf32>
    %6 = arith.addf %3, %5 : vector<8x256xf32>
    %7 = arith.truncf %6 : vector<8x256xf32> to vector<8x256xbf16>
    %cst_5 = arith.constant 0.000000e+00 : bf16
    %8 = vector.broadcast %cst_5 : bf16 to vector<8x256xbf16>
    %9 = arith.maximumf %7, %8 : vector<8x256xbf16>
    %c0_6 = arith.constant 0 : index
    %c0_7 = arith.constant 0 : index
    %10 = vector.load %arg5[%c0_6, %c0_7] : memref<256x256xbf16, #tpu.memory_space<vmem>>, vector<256x256xbf16>
    %cst_8 = arith.constant dense<0.000000e+00> : vector<8x256xf32>
    %11 = tpu.matmul %9, %10, %cst_8 {dimension_numbers = #tpu.dot_dimension_numbers<[1], [0], [0], [1], [0, 0, 1, 1], [], []>} : vector<8x256xbf16>, vector<256x256xbf16>, vector<8x256xf32> -> vector<8x256xf32>
    %c0_9 = arith.constant 0 : index
    %c0_10 = arith.constant 0 : index
    %12 = vector.load %arg6[%c0_9, %c0_10] : memref<1x256xf32, #tpu.memory_space<vmem>>, vector<1x256xf32>
    %13 = vector.broadcast %12 : vector<1x256xf32> to vector<8x256xf32>
    %14 = arith.addf %11, %13 : vector<8x256xf32>
    %15 = arith.truncf %14 : vector<8x256xf32> to vector<8x256xbf16>
    %cst_11 = arith.constant 0.000000e+00 : bf16
    %16 = vector.broadcast %cst_11 : bf16 to vector<8x256xbf16>
    %17 = arith.maximumf %15, %16 : vector<8x256xbf16>
    %c0_12 = arith.constant 0 : index
    %c0_13 = arith.constant 0 : index
    %18 = vector.load %arg7[%c0_12, %c0_13] : memref<256x256xbf16, #tpu.memory_space<vmem>>, vector<256x256xbf16>
    %cst_14 = arith.constant dense<0.000000e+00> : vector<8x256xf32>
    %19 = tpu.matmul %17, %18, %cst_14 {dimension_numbers = #tpu.dot_dimension_numbers<[1], [0], [0], [1], [0, 0, 1, 1], [], []>} : vector<8x256xbf16>, vector<256x256xbf16>, vector<8x256xf32> -> vector<8x256xf32>
    %c0_15 = arith.constant 0 : index
    %c0_16 = arith.constant 0 : index
    %20 = vector.load %arg8[%c0_15, %c0_16] : memref<1x256xf32, #tpu.memory_space<vmem>>, vector<1x256xf32>
    %21 = vector.broadcast %20 : vector<1x256xf32> to vector<8x256xf32>
    %22 = arith.addf %19, %21 : vector<8x256xf32>
    %23 = arith.truncf %22 : vector<8x256xf32> to vector<8x256xbf16>
    %cst_17 = arith.constant 0.000000e+00 : bf16
    %24 = vector.broadcast %cst_17 : bf16 to vector<8x256xbf16>
    %25 = arith.maximumf %23, %24 : vector<8x256xbf16>
    %c0_18 = arith.constant 0 : index
    %c0_19 = arith.constant 0 : index
    %26 = vector.load %arg9[%c0_18, %c0_19] : memref<256x128xbf16, #tpu.memory_space<vmem>>, vector<256x128xbf16>
    %cst_20 = arith.constant dense<0.000000e+00> : vector<8x128xf32>
    %27 = tpu.matmul %25, %26, %cst_20 {dimension_numbers = #tpu.dot_dimension_numbers<[1], [0], [0], [1], [0, 0, 1, 1], [], []>} : vector<8x256xbf16>, vector<256x128xbf16>, vector<8x128xf32> -> vector<8x128xf32>
    %c0_21 = arith.constant 0 : index
    %c0_22 = arith.constant 0 : index
    %28 = vector.load %arg10[%c0_21, %c0_22] : memref<1x128xf32, #tpu.memory_space<vmem>>, vector<1x128xf32>
    %29 = vector.broadcast %28 : vector<1x128xf32> to vector<8x128xf32>
    %30 = arith.addf %27, %29 : vector<8x128xf32>
    %31 = vector.extract_strided_slice %30 {offsets = [0, 0], sizes = [8, 1], strides = [1, 1]} : vector<8x128xf32> to vector<8x1xf32>
    %c0_23 = arith.constant 0 : index
    %c0_24 = arith.constant 0 : index
    %32 = vector.load %arg11[%c0_23, %c0_24] : memref<8x1xf32, #tpu.memory_space<vmem>>, vector<8x1xf32>
    tpu.vector_store %arg11[%c0_23, %c0_24], %31 {strides = array<i32>} : memref<8x1xf32, #tpu.memory_space<vmem>>, vector<8x1xf32>,
    %c8_i32 = arith.constant 8 : i32
    %33 = arith.muli %arg0, %c8_i32 : i32
    %34 = tpu.iota {dimensions = array<i32: 0>} : vector<8x1xi32>
    %35 = vector.broadcast %33 : i32 to vector<8x1xi32>
    %36 = arith.addi %35, %34 : vector<8x1xi32>
    %c8_i32_25 = arith.constant 8 : i32
    %37 = vector.broadcast %c8_i32_25 : i32 to vector<8x1xi32>
    %38 = arith.cmpi slt, %36, %37 : vector<8x1xi32>
    %c0_26 = arith.constant 0 : index
    %c0_27 = arith.constant 0 : index
    %39 = vector.load %arg2[%c0_26, %c0_27] : memref<8x1xf32, #tpu.memory_space<vmem>>, vector<8x1xf32>
    %40 = arith.subf %31, %39 : vector<8x1xf32>
    %cst_28 = arith.constant 0.000000e+00 : f32
    %41 = vector.broadcast %cst_28 : f32 to vector<8x1xf32>
    %42 = arith.select %38, %40, %41 : vector<8x1xi1>, vector<8x1xf32>
    %43 = arith.mulf %42, %42 : vector<8x1xf32>
    %44 = vector.shape_cast %43 : vector<8x1xf32> to vector<1x8x1xf32>
    %cst_29 = arith.constant dense<0.000000e+00> : vector<1xf32>
    %45 = vector.multi_reduction <add>, %44, %cst_29 [1, 2] : vector<1x8x1xf32> to vector<1xf32>
    %46 = vector.shape_cast %45 : vector<1xf32> to vector<1x1x1xf32>
    %47 = vector.extract %46[0, 0, 0] : f32 from vector<1x1x1xf32>
    %48 = vector.broadcast %47 : f32 to vector<8x128xf32>
    %c0_30 = arith.constant 0 : index
    %c0_31 = arith.constant 0 : index
    %49 = vector.load %arg12[%c0_30, %c0_31] : memref<8x128xf32, #tpu.memory_space<vmem>>, vector<8x128xf32>
    tpu.vector_store %arg12[%c0_30, %c0_31], %48 {strides = array<i32>} : memref<8x128xf32, #tpu.memory_space<vmem>>, vector<8x128xf32>,
    return
  }
  func.func @transform_0(%arg0: i32) -> (i32, i32) {
    %c0_i32 = arith.constant 0 : i32
    %c0_i32_0 = arith.constant 0 : i32
    return %arg0, %c0_i32 : i32, i32
  }
  func.func @transform_1(%arg0: i32) -> (i32, i32) {
    %c0_i32 = arith.constant 0 : i32
    %c0_i32_0 = arith.constant 0 : i32
    return %arg0, %c0_i32 : i32, i32
  }
  func.func @transform_2(%arg0: i32) -> (i32, i32) {
    %c0_i32 = arith.constant 0 : i32
    %c0_i32_0 = arith.constant 0 : i32
    %c0_i32_1 = arith.constant 0 : i32
    return %c0_i32, %c0_i32_0 : i32, i32
  }
  func.func @transform_3(%arg0: i32) -> (i32, i32) {
    %c0_i32 = arith.constant 0 : i32
    %c0_i32_0 = arith.constant 0 : i32
    %c0_i32_1 = arith.constant 0 : i32
    return %c0_i32, %c0_i32_0 : i32, i32
  }
  func.func @transform_4(%arg0: i32) -> (i32, i32) {
    %c0_i32 = arith.constant 0 : i32
    %c0_i32_0 = arith.constant 0 : i32
    %c0_i32_1 = arith.constant 0 : i32
    return %c0_i32, %c0_i32_0 : i32, i32
  }
  func.func @transform_5(%arg0: i32) -> (i32, i32) {
    %c0_i32 = arith.constant 0 : i32
    %c0_i32_0 = arith.constant 0 : i32
    %c0_i32_1 = arith.constant 0 : i32
    return %c0_i32, %c0_i32_0 : i32, i32
  }
  func.func @transform_6(%arg0: i32) -> (i32, i32) {
    %c0_i32 = arith.constant 0 : i32
    %c0_i32_0 = arith.constant 0 : i32
    %c0_i32_1 = arith.constant 0 : i32
    return %c0_i32, %c0_i32_0 : i32, i32
  }
  func.func @transform_7(%arg0: i32) -> (i32, i32) {
    %c0_i32 = arith.constant 0 : i32
    %c0_i32_0 = arith.constant 0 : i32
    %c0_i32_1 = arith.constant 0 : i32
    return %c0_i32, %c0_i32_0 : i32, i32
  }
  func.func @transform_8(%arg0: i32) -> (i32, i32) {
    %c0_i32 = arith.constant 0 : i32
    %c0_i32_0 = arith.constant 0 : i32
    %c0_i32_1 = arith.constant 0 : i32
    return %c0_i32, %c0_i32_0 : i32, i32
  }
  func.func @transform_9(%arg0: i32) -> (i32, i32) {
    %c0_i32 = arith.constant 0 : i32
    %c0_i32_0 = arith.constant 0 : i32
    %c0_i32_1 = arith.constant 0 : i32
    return %c0_i32, %c0_i32_0 : i32, i32
  }
  func.func @transform_10(%arg0: i32) -> (i32, i32) {
    %c0_i32 = arith.constant 0 : i32
    %c0_i32_0 = arith.constant 0 : i32
    return %arg0, %c0_i32 : i32, i32
  }
  func.func @transform_11(%arg0: i32) -> (i32, i32) {
    %c0_i32 = arith.constant 0 : i32
    %c0_i32_0 = arith.constant 0 : i32
    return %arg0, %c0_i32 : i32, i32
  }
}

</mosaic_0001>

<llo_original>
// kernel: confidnet4layers_forward.1
$region0: #{confidnet4layers_forward.1}
  #allocation0 [shape = 'u32[]', space=smem, size = 0x4, offset = 0x4, fixed_abs, tag = 'smem constant byte address 0x4 - core index']
  #allocation1 [shape = 'u32[144,128]{1,0:T(1,128)}', space=vmem, size = 0x12000, scoped, tag = 'internal scratch']
  %s0 = inlined_call_operand.vmem [shape: f32[8,32], index: 0, kind: input, shape index: {}]
  %s1 = inlined_call_operand.vmem [shape: f32[8,1], index: 1, kind: input, shape index: {}]
  %s2 = inlined_call_operand.vmem [shape: bf16[32,256], index: 2, kind: input, shape index: {}]
  %s3 = inlined_call_operand.vmem [shape: f32[1,256], index: 3, kind: input, shape index: {}]
  %s4 = inlined_call_operand.vmem [shape: bf16[256,256], index: 4, kind: input, shape index: {}]
  %s5 = inlined_call_operand.vmem [shape: f32[1,256], index: 5, kind: input, shape index: {}]
  %s6 = inlined_call_operand.vmem [shape: bf16[256,256], index: 6, kind: input, shape index: {}]
  %s7 = inlined_call_operand.vmem [shape: f32[1,256], index: 7, kind: input, shape index: {}]
  %s8 = inlined_call_operand.vmem [shape: bf16[256,128], index: 8, kind: input, shape index: {}]
  %s9 = inlined_call_operand.vmem [shape: f32[1,128], index: 9, kind: input, shape index: {}]
  %s10 = inlined_call_operand.vmem [shape: f32[8,1], index: 10, kind: output, shape index: {0}]
  %s11 = inlined_call_operand.vmem [shape: f32[8,128], index: 11, kind: output, shape index: {1}]
  %12 = xla_tuple %s10, %s11
  %s13 = sld [smem:[#allocation0]]
  $region58: #{confidnet4layers_forward.1} parent=0
    _
  %s15 = ssub.s32 1, %s13
  %s16 = scalar_select 0, %s15, %s13
  // Predicated region
  $region2: #{confidnet4layers_forward.1} parent=0 // pred_check
    _
  $region3: #{confidnet4layers_forward.1} parent=0 // pred_check_branch
    %18 = sbr.rel (0) target = $region5
  $region4: #{confidnet4layers_forward.1} parent=0 // pred_region
    _
  $region5: #{confidnet4layers_forward.1} parent=0 // pred_fallthru
    _
  // Predicated region
  $region6: #{confidnet4layers_forward.1} parent=0 // pred_check
    _
  $region7: #{confidnet4layers_forward.1} parent=0 // pred_check_branch
    %20 = sbr.rel (0) target = $region9
  $region8: #{confidnet4layers_forward.1} parent=0 // pred_region
    _
  $region9: #{confidnet4layers_forward.1} parent=0 // pred_fallthru
    _
  // Predicated region
  $region10: #{confidnet4layers_forward.1} parent=0 // pred_check
    _
  $region11: #{confidnet4layers_forward.1} parent=0 // pred_check_branch
    %22 = sbr.rel (0) target = $region13
  $region12: #{confidnet4layers_forward.1} parent=0 // pred_region
    _
  $region13: #{confidnet4layers_forward.1} parent=0 // pred_fallthru
    _
  // Predicated region
  $region14: #{confidnet4layers_forward.1} parent=0 // pred_check
    _
  $region15: #{confidnet4layers_forward.1} parent=0 // pred_check_branch
    %24 = sbr.rel (0) target = $region17
  $region16: #{confidnet4layers_forward.1} parent=0 // pred_region
    _
  $region17: #{confidnet4layers_forward.1} parent=0 // pred_fallthru
    _
  // Predicated region
  $region18: #{confidnet4layers_forward.1} parent=0 // pred_check
    _
  $region19: #{confidnet4layers_forward.1} parent=0 // pred_check_branch
    %26 = sbr.rel (0) target = $region21
  $region20: #{confidnet4layers_forward.1} parent=0 // pred_region
    _
  $region21: #{confidnet4layers_forward.1} parent=0 // pred_fallthru
    _
  // Predicated region
  $region22: #{confidnet4layers_forward.1} parent=0 // pred_check
    _
  $region23: #{confidnet4layers_forward.1} parent=0 // pred_check_branch
    %28 = sbr.rel (0) target = $region25
  $region24: #{confidnet4layers_forward.1} parent=0 // pred_region
    _
  $region25: #{confidnet4layers_forward.1} parent=0 // pred_fallthru
    _
  // Predicated region
  $region26: #{confidnet4layers_forward.1} parent=0 // pred_check
    _
  $region27: #{confidnet4layers_forward.1} parent=0 // pred_check_branch
    %30 = sbr.rel (0) target = $region29
  $region28: #{confidnet4layers_forward.1} parent=0 // pred_region
    _
  $region29: #{confidnet4layers_forward.1} parent=0 // pred_fallthru
    _
  // Predicated region
  $region30: #{confidnet4layers_forward.1} parent=0 // pred_check
    _
  $region31: #{confidnet4layers_forward.1} parent=0 // pred_check_branch
    %32 = sbr.rel (0) target = $region33
  $region32: #{confidnet4layers_forward.1} parent=0 // pred_region
    _
  $region33: #{confidnet4layers_forward.1} parent=0 // pred_fallthru
    _
  // Predicated region
  $region34: #{confidnet4layers_forward.1} parent=0 // pred_check
    _
  $region35: #{confidnet4layers_forward.1} parent=0 // pred_check_branch
    %34 = sbr.rel (0) target = $region37
  $region36: #{confidnet4layers_forward.1} parent=0 // pred_region
    _
  $region37: #{confidnet4layers_forward.1} parent=0 // pred_fallthru
    _
  // Predicated region
  $region38: #{confidnet4layers_forward.1} parent=0 // pred_check
    _
  $region39: #{confidnet4layers_forward.1} parent=0 // pred_check_branch
    %36 = sbr.rel (0) target = $region41
  $region40: #{confidnet4layers_forward.1} parent=0 // pred_region
    _
  $region41: #{confidnet4layers_forward.1} parent=0 // pred_fallthru
    _
  %v38 = vld [vmem:[%s0] sm:$0xff]
  %v39 = vpack.c.bf16 %v38, %v38
  %v40 = vld [vmem:[%s2] sm:$0xff]
  %v41 = vld [vmem:[%s2 + $0x8] sm:$0xff]
  %v42 = vld [vmem:[%s2 + $0x10] sm:$0xff]
  %v43 = vld [vmem:[%s2 + $0x18] sm:$0xff]
  %v44 = vld [vmem:[%s3] sm:$0x3]
  %v46 = vlaneseq
  %v47 = vshrl.u32 %v46, 7
  %v48 = vsub.s32 0, %v47
  %v49 = vrot.slane %v44, %v48
  %v50 = vlaneseq
  %v51 = vshrl.u32 %v50, 7
  %v52 = vsub.s32 1, %v51
  %v53 = vrot.slane %v44, %v52
  %v60 = vunpack.c.l.b16 %v40
  %v61 = vunpack.c.h.b16 %v40
  %v62 = vunpack.c.l.b16 %v41
  %v63 = vunpack.c.h.b16 %v41
  %v64 = vunpack.c.l.b16 %v42
  %v65 = vunpack.c.h.b16 %v42
  %v66 = vunpack.c.l.b16 %v43
  %v67 = vunpack.c.h.b16 %v43
  %v68 = vpack.c.b16 %v62, %v60
  %v69 = vpack.c.b16 %v63, %v61
  %v70 = vpack.c.b16 %v66, %v64
  %v71 = vpack.c.b16 %v67, %v65
  %vm76 = vcmask 261120
  %v78 = vsel %vm76, %v39, 0
  %80 = vmatprep.subr.bf16.mxu0 %v69
  %81 = vmatpush1.bf16.msra.mxu0 %v68
  %82 = vmatprep.subr.bf16.mxu0 %v71
  %83 = vmatpush1.bf16.msra.mxu0 %v70
  %84 = vmatprep.subr.bf16.mxu0 0
  %85 = vmatpush1.bf16.msra.mxu0 0
  %86 = vmatprep.subr.bf16.mxu0 0
  %87 = vmatpush1.bf16.msra.mxu0 0
  %88 = vmatprep.subr.bf16.mxu0 0
  %89 = vmatpush1.bf16.msra.mxu0 0
  %90 = vmatprep.subr.bf16.mxu0 0
  %91 = vmatpush1.bf16.msra.mxu0 0
  %92 = vmatprep.subr.bf16.mxu0 0
  %93 = vmatpush1.bf16.msra.mxu0 0
  %94 = vmatprep.subr.bf16.mxu0 0
  %95 = vmatpush1.bf16.msra.mxu0 0
  %96 = vmatprep.subr.bf16.mxu0 0
  %97 = vmatpush1.bf16.msra.mxu0 0
  %98 = vmatprep.subr.bf16.mxu0 0
  %99 = vmatpush1.bf16.msra.mxu0 0
  %100 = vmatprep.subr.bf16.mxu0 0
  %101 = vmatpush1.bf16.msra.mxu0 0
  %102 = vmatprep.subr.bf16.mxu0 0
  %103 = vmatpush1.bf16.msra.mxu0 0
  %104 = vmatprep.subr.bf16.mxu0 0
  %105 = vmatpush1.bf16.msra.mxu0 0
  %106 = vmatprep.subr.bf16.mxu0 0
  %107 = vmatpush1.bf16.msra.mxu0 0
  %108 = vmatprep.subr.bf16.mxu0 0
  %109 = vmatpush1.bf16.msra.mxu0 0
  %110 = vmatprep.subr.bf16.mxu0 0
  %111 = vmatpush1.bf16.msra.mxu0 0
  %112 = vmatprep.mubr.bf16.mxu0 0
  %113 = vmatmul.mubr.bf16.gmra.mrb[0].mxu0 %v78
  %v114 = vpop.f32.mrb[0].mxu0
  %v115 = vadd.f32 %v49, %v114
  %v116 = vpop.f32.mrb[0].mxu0
  %v117 = vadd.f32 %v53, %v116
  %v118 = vpop.f32.mrb[0].mxu0
  %v119 = vpop.f32.mrb[0].mxu0
  %120 = vdwg.mxu0
  %v121 = vpack.c.bf16 %v115, %v115
  %v122 = vpack.c.bf16 %v117, %v117
  %v123 = vmax.bf16 %v121, 0
  %v124 = vmax.bf16 %v122, 0
  %v125 = vld [vmem:[%s4] sm:$0xff]
  %v126 = vld [vmem:[%s4 + $0x8] sm:$0xff]
  %v127 = vld [vmem:[%s4 + $0x10] sm:$0xff]
  %v128 = vld [vmem:[%s4 + $0x18] sm:$0xff]
  %v129 = vld [vmem:[%s4 + $0x20] sm:$0xff]
  %v130 = vld [vmem:[%s4 + $0x28] sm:$0xff]
  %v131 = vld [vmem:[%s4 + $0x30] sm:$0xff]
  %v132 = vld [vmem:[%s4 + $0x38] sm:$0xff]
  %v133 = vld [vmem:[%s4 + $0x40] sm:$0xff]
  %v134 = vld [vmem:[%s4 + $0x48] sm:$0xff]
  %v135 = vld [vmem:[%s4 + $0x50] sm:$0xff]
  %v136 = vld [vmem:[%s4 + $0x58] sm:$0xff]
  %v137 = vld [vmem:[%s4 + $0x60] sm:$0xff]
  %v138 = vld [vmem:[%s4 + $0x68] sm:$0xff]
  %v139 = vld [vmem:[%s4 + $0x70] sm:$0xff]
  %v140 = vld [vmem:[%s4 + $0x78] sm:$0xff]
  %v141 = vld [vmem:[%s4 + $0x80] sm:$0xff]
  %v142 = vld [vmem:[%s4 + $0x88] sm:$0xff]
  %v143 = vld [vmem:[%s4 + $0x90] sm:$0xff]
  %v144 = vld [vmem:[%s4 + $0x98] sm:$0xff]
  %v145 = vld [vmem:[%s4 + $0xa0] sm:$0xff]
  %v146 = vld [vmem:[%s4 + $0xa8] sm:$0xff]
  %v147 = vld [vmem:[%s4 + $0xb0] sm:$0xff]
  %v148 = vld [vmem:[%s4 + $0xb8] sm:$0xff]
  %v149 = vld [vmem:[%s4 + $0xc0] sm:$0xff]
  %v150 = vld [vmem:[%s4 + $0xc8] sm:$0xff]
  %v151 = vld [vmem:[%s4 + $0xd0] sm:$0xff]
  %v152 = vld [vmem:[%s4 + $0xd8] sm:$0xff]
  %v153 = vld [vmem:[%s4 + $0xe0] sm:$0xff]
  %v154 = vld [vmem:[%s4 + $0xe8] sm:$0xff]
  %v155 = vld [vmem:[%s4 + $0xf0] sm:$0xff]
  %v156 = vld [vmem:[%s4 + $0xf8] sm:$0xff]
  %v157 = vld [vmem:[%s5] sm:$0x3]
  %v159 = vlaneseq
  %v160 = vshrl.u32 %v159, 7
  %v161 = vsub.s32 0, %v160
  %v162 = vrot.slane %v157, %v161
  %v163 = vlaneseq
  %v164 = vshrl.u32 %v163, 7
  %v165 = vsub.s32 1, %v164
  %v166 = vrot.slane %v157, %v165
  %v201 = vunpack.c.l.b16 %v125
  %v202 = vunpack.c.h.b16 %v125
  %v203 = vunpack.c.l.b16 %v126
  %v204 = vunpack.c.h.b16 %v126
  %v205 = vunpack.c.l.b16 %v127
  %v206 = vunpack.c.h.b16 %v127
  %v207 = vunpack.c.l.b16 %v128
  %v208 = vunpack.c.h.b16 %v128
  %v209 = vunpack.c.l.b16 %v129
  %v210 = vunpack.c.h.b16 %v129
  %v211 = vunpack.c.l.b16 %v130
  %v212 = vunpack.c.h.b16 %v130
  %v213 = vunpack.c.l.b16 %v131
  %v214 = vunpack.c.h.b16 %v131
  %v215 = vunpack.c.l.b16 %v132
  %v216 = vunpack.c.h.b16 %v132
  %v217 = vunpack.c.l.b16 %v133
  %v218 = vunpack.c.h.b16 %v133
  %v219 = vunpack.c.l.b16 %v134
  %v220 = vunpack.c.h.b16 %v134
  %v221 = vunpack.c.l.b16 %v135
  %v222 = vunpack.c.h.b16 %v135
  %v223 = vunpack.c.l.b16 %v136
  %v224 = vunpack.c.h.b16 %v136
  %v225 = vunpack.c.l.b16 %v137
  %v226 = vunpack.c.h.b16 %v137
  %v227 = vunpack.c.l.b16 %v138
  %v228 = vunpack.c.h.b16 %v138
  %v229 = vunpack.c.l.b16 %v139
  %v230 = vunpack.c.h.b16 %v139
  %v231 = vunpack.c.l.b16 %v140
  %v232 = vunpack.c.h.b16 %v140
  %v233 = vunpack.c.l.b16 %v141
  %v234 = vunpack.c.h.b16 %v141
  %v235 = vunpack.c.l.b16 %v142
  %v236 = vunpack.c.h.b16 %v142
  %v237 = vunpack.c.l.b16 %v143
  %v238 = vunpack.c.h.b16 %v143
  %v239 = vunpack.c.l.b16 %v144
  %v240 = vunpack.c.h.b16 %v144
  %v241 = vunpack.c.l.b16 %v145
  %v242 = vunpack.c.h.b16 %v145
  %v243 = vunpack.c.l.b16 %v146
  %v244 = vunpack.c.h.b16 %v146
  %v245 = vunpack.c.l.b16 %v147
  %v246 = vunpack.c.h.b16 %v147
  %v247 = vunpack.c.l.b16 %v148
  %v248 = vunpack.c.h.b16 %v148
  %v249 = vunpack.c.l.b16 %v149
  %v250 = vunpack.c.h.b16 %v149
  %v251 = vunpack.c.l.b16 %v150
  %v252 = vunpack.c.h.b16 %v150
  %v253 = vunpack.c.l.b16 %v151
  %v254 = vunpack.c.h.b16 %v151
  %v255 = vunpack.c.l.b16 %v152
  %v256 = vunpack.c.h.b16 %v152
  %v257 = vunpack.c.l.b16 %v153
  %v258 = vunpack.c.h.b16 %v153
  %v259 = vunpack.c.l.b16 %v154
  %v260 = vunpack.c.h.b16 %v154
  %v261 = vunpack.c.l.b16 %v155
  %v262 = vunpack.c.h.b16 %v155
  %v263 = vunpack.c.l.b16 %v156
  %v264 = vunpack.c.h.b16 %v156
  %v265 = vpack.c.b16 %v203, %v201
  %v266 = vpack.c.b16 %v204, %v202
  %v267 = vpack.c.b16 %v207, %v205
  %v268 = vpack.c.b16 %v208, %v206
  %v269 = vpack.c.b16 %v211, %v209
  %v270 = vpack.c.b16 %v212, %v210
  %v271 = vpack.c.b16 %v215, %v213
  %v272 = vpack.c.b16 %v216, %v214
  %v273 = vpack.c.b16 %v219, %v217
  %v274 = vpack.c.b16 %v220, %v218
  %v275 = vpack.c.b16 %v223, %v221
  %v276 = vpack.c.b16 %v224, %v222
  %v277 = vpack.c.b16 %v227, %v225
  %v278 = vpack.c.b16 %v228, %v226
  %v279 = vpack.c.b16 %v231, %v229
  %v280 = vpack.c.b16 %v232, %v230
  %v281 = vpack.c.b16 %v235, %v233
  %v282 = vpack.c.b16 %v236, %v234
  %v283 = vpack.c.b16 %v239, %v237
  %v284 = vpack.c.b16 %v240, %v238
  %v285 = vpack.c.b16 %v243, %v241
  %v286 = vpack.c.b16 %v244, %v242
  %v287 = vpack.c.b16 %v247, %v245
  %v288 = vpack.c.b16 %v248, %v246
  %v289 = vpack.c.b16 %v251, %v249
  %v290 = vpack.c.b16 %v252, %v250
  %v291 = vpack.c.b16 %v255, %v253
  %v292 = vpack.c.b16 %v256, %v254
  %v293 = vpack.c.b16 %v259, %v257
  %v294 = vpack.c.b16 %v260, %v258
  %v295 = vpack.c.b16 %v263, %v261
  %v296 = vpack.c.b16 %v264, %v262
  %329 = vmatprep.subr.bf16.mxu0 %v266
  %330 = vmatpush1.bf16.msra.mxu0 %v265
  %331 = vmatprep.subr.bf16.mxu0 %v268
  %332 = vmatpush1.bf16.msra.mxu0 %v267
  %333 = vmatprep.subr.bf16.mxu0 %v270
  %334 = vmatpush1.bf16.msra.mxu0 %v269
  %335 = vmatprep.subr.bf16.mxu0 %v272
  %336 = vmatpush1.bf16.msra.mxu0 %v271
  %337 = vmatprep.subr.bf16.mxu0 %v274
  %338 = vmatpush1.bf16.msra.mxu0 %v273
  %339 = vmatprep.subr.bf16.mxu0 %v276
  %340 = vmatpush1.bf16.msra.mxu0 %v275
  %341 = vmatprep.subr.bf16.mxu0 %v278
  %342 = vmatpush1.bf16.msra.mxu0 %v277
  %343 = vmatprep.subr.bf16.mxu0 %v280
  %344 = vmatpush1.bf16.msra.mxu0 %v279
  %345 = vmatprep.subr.bf16.mxu0 %v282
  %346 = vmatpush1.bf16.msra.mxu0 %v281
  %347 = vmatprep.subr.bf16.mxu0 %v284
  %348 = vmatpush1.bf16.msra.mxu0 %v283
  %349 = vmatprep.subr.bf16.mxu0 %v286
  %350 = vmatpush1.bf16.msra.mxu0 %v285
  %351 = vmatprep.subr.bf16.mxu0 %v288
  %352 = vmatpush1.bf16.msra.mxu0 %v287
  %353 = vmatprep.subr.bf16.mxu0 %v290
  %354 = vmatpush1.bf16.msra.mxu0 %v289
  %355 = vmatprep.subr.bf16.mxu0 %v292
  %356 = vmatpush1.bf16.msra.mxu0 %v291
  %357 = vmatprep.subr.bf16.mxu0 %v294
  %358 = vmatpush1.bf16.msra.mxu0 %v293
  %359 = vmatprep.subr.bf16.mxu0 %v296
  %360 = vmatpush1.bf16.msra.mxu0 %v295
  %361 = vmatprep.mubr.bf16.mxu0 %v124
  %362 = vmatmul.mubr.bf16.gmra.mrb[0].mxu0 %v123
  %v363 = vpop.f32.mrb[0].mxu0
  %v364 = vadd.f32 %v162, %v363
  %v365 = vpop.f32.mrb[0].mxu0
  %v366 = vadd.f32 %v166, %v365
  %v367 = vpop.f32.mrb[0].mxu0
  %v368 = vpop.f32.mrb[0].mxu0
  %369 = vdwg.mxu0
  %v370 = vpack.c.bf16 %v364, %v364
  %v371 = vpack.c.bf16 %v366, %v366
  %v372 = vmax.bf16 %v370, 0
  %v373 = vmax.bf16 %v371, 0
  %v374 = vld [vmem:[%s6] sm:$0xff]
  %v375 = vld [vmem:[%s6 + $0x8] sm:$0xff]
  %v376 = vld [vmem:[%s6 + $0x10] sm:$0xff]
  %v377 = vld [vmem:[%s6 + $0x18] sm:$0xff]
  %v378 = vld [vmem:[%s6 + $0x20] sm:$0xff]
  %v379 = vld [vmem:[%s6 + $0x28] sm:$0xff]
  %v380 = vld [vmem:[%s6 + $0x30] sm:$0xff]
  %v381 = vld [vmem:[%s6 + $0x38] sm:$0xff]
  %v382 = vld [vmem:[%s6 + $0x40] sm:$0xff]
  %v383 = vld [vmem:[%s6 + $0x48] sm:$0xff]
  %v384 = vld [vmem:[%s6 + $0x50] sm:$0xff]
  %v385 = vld [vmem:[%s6 + $0x58] sm:$0xff]
  %v386 = vld [vmem:[%s6 + $0x60] sm:$0xff]
  %v387 = vld [vmem:[%s6 + $0x68] sm:$0xff]
  %v388 = vld [vmem:[%s6 + $0x70] sm:$0xff]
  %v389 = vld [vmem:[%s6 + $0x78] sm:$0xff]
  %v390 = vld [vmem:[%s6 + $0x80] sm:$0xff]
  %v391 = vld [vmem:[%s6 + $0x88] sm:$0xff]
  %v392 = vld [vmem:[%s6 + $0x90] sm:$0xff]
  %v393 = vld [vmem:[%s6 + $0x98] sm:$0xff]
  %v394 = vld [vmem:[%s6 + $0xa0] sm:$0xff]
  %v395 = vld [vmem:[%s6 + $0xa8] sm:$0xff]
  %v396 = vld [vmem:[%s6 + $0xb0] sm:$0xff]
  %v397 = vld [vmem:[%s6 + $0xb8] sm:$0xff]
  %v398 = vld [vmem:[%s6 + $0xc0] sm:$0xff]
  %v399 = vld [vmem:[%s6 + $0xc8] sm:$0xff]
  %v400 = vld [vmem:[%s6 + $0xd0] sm:$0xff]
  %v401 = vld [vmem:[%s6 + $0xd8] sm:$0xff]
  %v402 = vld [vmem:[%s6 + $0xe0] sm:$0xff]
  %v403 = vld [vmem:[%s6 + $0xe8] sm:$0xff]
  %v404 = vld [vmem:[%s6 + $0xf0] sm:$0xff]
  %v405 = vld [vmem:[%s6 + $0xf8] sm:$0xff]
  %v406 = vld [vmem:[%s7] sm:$0x3]
  %v408 = vlaneseq
  %v409 = vshrl.u32 %v408, 7
  %v410 = vsub.s32 0, %v409
  %v411 = vrot.slane %v406, %v410
  %v412 = vlaneseq
  %v413 = vshrl.u32 %v412, 7
  %v414 = vsub.s32 1, %v413
  %v415 = vrot.slane %v406, %v414
  %v450 = vunpack.c.l.b16 %v374
  %v451 = vunpack.c.h.b16 %v374
  %v452 = vunpack.c.l.b16 %v375
  %v453 = vunpack.c.h.b16 %v375
  %v454 = vunpack.c.l.b16 %v376
  %v455 = vunpack.c.h.b16 %v376
  %v456 = vunpack.c.l.b16 %v377
  %v457 = vunpack.c.h.b16 %v377
  %v458 = vunpack.c.l.b16 %v378
  %v459 = vunpack.c.h.b16 %v378
  %v460 = vunpack.c.l.b16 %v379
  %v461 = vunpack.c.h.b16 %v379
  %v462 = vunpack.c.l.b16 %v380
  %v463 = vunpack.c.h.b16 %v380
  %v464 = vunpack.c.l.b16 %v381
  %v465 = vunpack.c.h.b16 %v381
  %v466 = vunpack.c.l.b16 %v382
  %v467 = vunpack.c.h.b16 %v382
  %v468 = vunpack.c.l.b16 %v383
  %v469 = vunpack.c.h.b16 %v383
  %v470 = vunpack.c.l.b16 %v384
  %v471 = vunpack.c.h.b16 %v384
  %v472 = vunpack.c.l.b16 %v385
  %v473 = vunpack.c.h.b16 %v385
  %v474 = vunpack.c.l.b16 %v386
  %v475 = vunpack.c.h.b16 %v386
  %v476 = vunpack.c.l.b16 %v387
  %v477 = vunpack.c.h.b16 %v387
  %v478 = vunpack.c.l.b16 %v388
  %v479 = vunpack.c.h.b16 %v388
  %v480 = vunpack.c.l.b16 %v389
  %v481 = vunpack.c.h.b16 %v389
  %v482 = vunpack.c.l.b16 %v390
  %v483 = vunpack.c.h.b16 %v390
  %v484 = vunpack.c.l.b16 %v391
  %v485 = vunpack.c.h.b16 %v391
  %v486 = vunpack.c.l.b16 %v392
  %v487 = vunpack.c.h.b16 %v392
  %v488 = vunpack.c.l.b16 %v393
  %v489 = vunpack.c.h.b16 %v393
  %v490 = vunpack.c.l.b16 %v394
  %v491 = vunpack.c.h.b16 %v394
  %v492 = vunpack.c.l.b16 %v395
  %v493 = vunpack.c.h.b16 %v395
  %v494 = vunpack.c.l.b16 %v396
  %v495 = vunpack.c.h.b16 %v396
  %v496 = vunpack.c.l.b16 %v397
  %v497 = vunpack.c.h.b16 %v397
  %v498 = vunpack.c.l.b16 %v398
  %v499 = vunpack.c.h.b16 %v398
  %v500 = vunpack.c.l.b16 %v399
  %v501 = vunpack.c.h.b16 %v399
  %v502 = vunpack.c.l.b16 %v400
  %v503 = vunpack.c.h.b16 %v400
  %v504 = vunpack.c.l.b16 %v401
  %v505 = vunpack.c.h.b16 %v401
  %v506 = vunpack.c.l.b16 %v402
  %v507 = vunpack.c.h.b16 %v402
  %v508 = vunpack.c.l.b16 %v403
  %v509 = vunpack.c.h.b16 %v403
  %v510 = vunpack.c.l.b16 %v404
  %v511 = vunpack.c.h.b16 %v404
  %v512 = vunpack.c.l.b16 %v405
  %v513 = vunpack.c.h.b16 %v405
  %v514 = vpack.c.b16 %v452, %v450
  %v515 = vpack.c.b16 %v453, %v451
  %v516 = vpack.c.b16 %v456, %v454
  %v517 = vpack.c.b16 %v457, %v455
  %v518 = vpack.c.b16 %v460, %v458
  %v519 = vpack.c.b16 %v461, %v459
  %v520 = vpack.c.b16 %v464, %v462
  %v521 = vpack.c.b16 %v465, %v463
  %v522 = vpack.c.b16 %v468, %v466
  %v523 = vpack.c.b16 %v469, %v467
  %v524 = vpack.c.b16 %v472, %v470
  %v525 = vpack.c.b16 %v473, %v471
  %v526 = vpack.c.b16 %v476, %v474
  %v527 = vpack.c.b16 %v477, %v475
  %v528 = vpack.c.b16 %v480, %v478
  %v529 = vpack.c.b16 %v481, %v479
  %v530 = vpack.c.b16 %v484, %v482
  %v531 = vpack.c.b16 %v485, %v483
  %v532 = vpack.c.b16 %v488, %v486
  %v533 = vpack.c.b16 %v489, %v487
  %v534 = vpack.c.b16 %v492, %v490
  %v535 = vpack.c.b16 %v493, %v491
  %v536 = vpack.c.b16 %v496, %v494
  %v537 = vpack.c.b16 %v497, %v495
  %v538 = vpack.c.b16 %v500, %v498
  %v539 = vpack.c.b16 %v501, %v499
  %v540 = vpack.c.b16 %v504, %v502
  %v541 = vpack.c.b16 %v505, %v503
  %v542 = vpack.c.b16 %v508, %v506
  %v543 = vpack.c.b16 %v509, %v507
  %v544 = vpack.c.b16 %v512, %v510
  %v545 = vpack.c.b16 %v513, %v511
  %578 = vmatprep.subr.bf16.mxu0 %v515
  %579 = vmatpush1.bf16.msra.mxu0 %v514
  %580 = vmatprep.subr.bf16.mxu0 %v517
  %581 = vmatpush1.bf16.msra.mxu0 %v516
  %582 = vmatprep.subr.bf16.mxu0 %v519
  %583 = vmatpush1.bf16.msra.mxu0 %v518
  %584 = vmatprep.subr.bf16.mxu0 %v521
  %585 = vmatpush1.bf16.msra.mxu0 %v520
  %586 = vmatprep.subr.bf16.mxu0 %v523
  %587 = vmatpush1.bf16.msra.mxu0 %v522
  %588 = vmatprep.subr.bf16.mxu0 %v525
  %589 = vmatpush1.bf16.msra.mxu0 %v524
  %590 = vmatprep.subr.bf16.mxu0 %v527
  %591 = vmatpush1.bf16.msra.mxu0 %v526
  %592 = vmatprep.subr.bf16.mxu0 %v529
  %593 = vmatpush1.bf16.msra.mxu0 %v528
  %594 = vmatprep.subr.bf16.mxu0 %v531
  %595 = vmatpush1.bf16.msra.mxu0 %v530
  %596 = vmatprep.subr.bf16.mxu0 %v533
  %597 = vmatpush1.bf16.msra.mxu0 %v532
  %598 = vmatprep.subr.bf16.mxu0 %v535
  %599 = vmatpush1.bf16.msra.mxu0 %v534
  %600 = vmatprep.subr.bf16.mxu0 %v537
  %601 = vmatpush1.bf16.msra.mxu0 %v536
  %602 = vmatprep.subr.bf16.mxu0 %v539
  %603 = vmatpush1.bf16.msra.mxu0 %v538
  %604 = vmatprep.subr.bf16.mxu0 %v541
  %605 = vmatpush1.bf16.msra.mxu0 %v540
  %606 = vmatprep.subr.bf16.mxu0 %v543
  %607 = vmatpush1.bf16.msra.mxu0 %v542
  %608 = vmatprep.subr.bf16.mxu0 %v545
  %609 = vmatpush1.bf16.msra.mxu0 %v544
  %610 = vmatprep.mubr.bf16.mxu0 %v373
  %611 = vmatmul.mubr.bf16.gmra.mrb[0].mxu0 %v372
  %v612 = vpop.f32.mrb[0].mxu0
  %v613 = vadd.f32 %v411, %v612
  %v614 = vpop.f32.mrb[0].mxu0
  %v615 = vadd.f32 %v415, %v614
  %v616 = vpop.f32.mrb[0].mxu0
  %v617 = vpop.f32.mrb[0].mxu0
  %618 = vdwg.mxu0
  %v619 = vpack.c.bf16 %v613, %v613
  %v620 = vpack.c.bf16 %v615, %v615
  %v621 = vmax.bf16 %v619, 0
  %v622 = vmax.bf16 %v620, 0
  %v623 = vld [vmem:[%s8] sm:$0xf]
  %v624 = vld [vmem:[%s8 + $0x4] sm:$0xf]
  %v625 = vld [vmem:[%s8 + $0x8] sm:$0xf]
  %v626 = vld [vmem:[%s8 + $0xc] sm:$0xf]
  %v627 = vld [vmem:[%s8 + $0x10] sm:$0xf]
  %v628 = vld [vmem:[%s8 + $0x14] sm:$0xf]
  %v629 = vld [vmem:[%s8 + $0x18] sm:$0xf]
  %v630 = vld [vmem:[%s8 + $0x1c] sm:$0xf]
  %v631 = vld [vmem:[%s8 + $0x20] sm:$0xf]
  %v632 = vld [vmem:[%s8 + $0x24] sm:$0xf]
  %v633 = vld [vmem:[%s8 + $0x28] sm:$0xf]
  %v634 = vld [vmem:[%s8 + $0x2c] sm:$0xf]
  %v635 = vld [vmem:[%s8 + $0x30] sm:$0xf]
  %v636 = vld [vmem:[%s8 + $0x34] sm:$0xf]
  %v637 = vld [vmem:[%s8 + $0x38] sm:$0xf]
  %v638 = vld [vmem:[%s8 + $0x3c] sm:$0xf]
  %v639 = vld [vmem:[%s8 + $0x40] sm:$0xf]
  %v640 = vld [vmem:[%s8 + $0x44] sm:$0xf]
  %v641 = vld [vmem:[%s8 + $0x48] sm:$0xf]
  %v642 = vld [vmem:[%s8 + $0x4c] sm:$0xf]
  %v643 = vld [vmem:[%s8 + $0x50] sm:$0xf]
  %v644 = vld [vmem:[%s8 + $0x54] sm:$0xf]
  %v645 = vld [vmem:[%s8 + $0x58] sm:$0xf]
  %v646 = vld [vmem:[%s8 + $0x5c] sm:$0xf]
  %v647 = vld [vmem:[%s8 + $0x60] sm:$0xf]
  %v648 = vld [vmem:[%s8 + $0x64] sm:$0xf]
  %v649 = vld [vmem:[%s8 + $0x68] sm:$0xf]
  %v650 = vld [vmem:[%s8 + $0x6c] sm:$0xf]
  %v651 = vld [vmem:[%s8 + $0x70] sm:$0xf]
  %v652 = vld [vmem:[%s8 + $0x74] sm:$0xf]
  %v653 = vld [vmem:[%s8 + $0x78] sm:$0xf]
  %v654 = vld [vmem:[%s8 + $0x7c] sm:$0xf]
  %v655 = vld [vmem:[%s9] sm:$0x1]
  %v657 = vlaneseq
  %v658 = vshrl.u32 %v657, 7
  %v659 = vsub.s32 0, %v658
  %v660 = vrot.slane %v655, %v659
  %v694 = vunpack.c.l.b16 %v623
  %v695 = vunpack.c.l.b16 %v624
  %v696 = vunpack.c.l.b16 %v625
  %v697 = vunpack.c.l.b16 %v626
  %v698 = vunpack.c.l.b16 %v627
  %v699 = vunpack.c.l.b16 %v628
  %v700 = vunpack.c.l.b16 %v629
  %v701 = vunpack.c.l.b16 %v630
  %v702 = vunpack.c.l.b16 %v631
  %v703 = vunpack.c.l.b16 %v632
  %v704 = vunpack.c.l.b16 %v633
  %v705 = vunpack.c.l.b16 %v634
  %v706 = vunpack.c.l.b16 %v635
  %v707 = vunpack.c.l.b16 %v636
  %v708 = vunpack.c.l.b16 %v637
  %v709 = vunpack.c.l.b16 %v638
  %v710 = vunpack.c.l.b16 %v639
  %v711 = vunpack.c.l.b16 %v640
  %v712 = vunpack.c.l.b16 %v641
  %v713 = vunpack.c.l.b16 %v642
  %v714 = vunpack.c.l.b16 %v643
  %v715 = vunpack.c.l.b16 %v644
  %v716 = vunpack.c.l.b16 %v645
  %v717 = vunpack.c.l.b16 %v646
  %v718 = vunpack.c.l.b16 %v647
  %v719 = vunpack.c.l.b16 %v648
  %v720 = vunpack.c.l.b16 %v649
  %v721 = vunpack.c.l.b16 %v650
  %v722 = vunpack.c.l.b16 %v651
  %v723 = vunpack.c.l.b16 %v652
  %v724 = vunpack.c.l.b16 %v653
  %v725 = vunpack.c.l.b16 %v654
  %v726 = vpack.c.b16 %v695, %v694
  %v727 = vpack.c.b16 %v697, %v696
  %v728 = vpack.c.b16 %v699, %v698
  %v729 = vpack.c.b16 %v701, %v700
  %v730 = vpack.c.b16 %v703, %v702
  %v731 = vpack.c.b16 %v705, %v704
  %v732 = vpack.c.b16 %v707, %v706
  %v733 = vpack.c.b16 %v709, %v708
  %v734 = vpack.c.b16 %v711, %v710
  %v735 = vpack.c.b16 %v713, %v712
  %v736 = vpack.c.b16 %v715, %v714
  %v737 = vpack.c.b16 %v717, %v716
  %v738 = vpack.c.b16 %v719, %v718
  %v739 = vpack.c.b16 %v721, %v720
  %v740 = vpack.c.b16 %v723, %v722
  %v741 = vpack.c.b16 %v725, %v724
  %758 = vmatprep.subr.bf16.mxu0 0
  %759 = vmatpush1.bf16.msra.mxu0 %v726
  %760 = vmatprep.subr.bf16.mxu0 0
  %761 = vmatpush1.bf16.msra.mxu0 %v727
  %762 = vmatprep.subr.bf16.mxu0 0
  %763 = vmatpush1.bf16.msra.mxu0 %v728
  %764 = vmatprep.subr.bf16.mxu0 0
  %765 = vmatpush1.bf16.msra.mxu0 %v729
  %766 = vmatprep.subr.bf16.mxu0 0
  %767 = vmatpush1.bf16.msra.mxu0 %v730
  %768 = vmatprep.subr.bf16.mxu0 0
  %769 = vmatpush1.bf16.msra.mxu0 %v731
  %770 = vmatprep.subr.bf16.mxu0 0
  %771 = vmatpush1.bf16.msra.mxu0 %v732
  %772 = vmatprep.subr.bf16.mxu0 0
  %773 = vmatpush1.bf16.msra.mxu0 %v733
  %774 = vmatprep.subr.bf16.mxu0 0
  %775 = vmatpush1.bf16.msra.mxu0 %v734
  %776 = vmatprep.subr.bf16.mxu0 0
  %777 = vmatpush1.bf16.msra.mxu0 %v735
  %778 = vmatprep.subr.bf16.mxu0 0
  %779 = vmatpush1.bf16.msra.mxu0 %v736
  %780 = vmatprep.subr.bf16.mxu0 0
  %781 = vmatpush1.bf16.msra.mxu0 %v737
  %782 = vmatprep.subr.bf16.mxu0 0
  %783 = vmatpush1.bf16.msra.mxu0 %v738
  %784 = vmatprep.subr.bf16.mxu0 0
  %785 = vmatpush1.bf16.msra.mxu0 %v739
  %786 = vmatprep.subr.bf16.mxu0 0
  %787 = vmatpush1.bf16.msra.mxu0 %v740
  %788 = vmatprep.subr.bf16.mxu0 0
  %789 = vmatpush1.bf16.msra.mxu0 %v741
  %790 = vmatprep.mubr.bf16.mxu0 %v622
  %791 = vmatmul.mubr.bf16.gmra.mrb[0].mxu0 %v621
  %v792 = vpop.f32.mrb[0].mxu0
  %v793 = vadd.f32 %v660, %v792
  %v794 = vpop.f32.mrb[0].mxu0
  %v795 = vpop.f32.mrb[0].mxu0
  %v796 = vpop.f32.mrb[0].mxu0
  %797 = vdwg.mxu0
  %vm798 = vcmask 7168
  %799 = vst.msk [vmem:[%s10] sm:$0xff] %vm798, %v793
  %s800 = smul.u32 0, 8
  %v801 = vlaneseq
  %v802 = vshrl.u32 %v801, 7
  %v803 = vstv %s800
  %v804 = vadd.s32 %v803, %v802
  %vm805 = vcmp.lt.s32.totalorder %v804, 8
  %v806 = vld [vmem:[%s1] sm:$0xff]
  %v807 = vsub.f32 %v793, %v806
  %v808 = vsel %vm805, %v807, 0.0
  %v809 = vmul.f32 %v808, %v808
  %v810 = vsel %vm798, %v809, 0.0
  %811 = vadd.xlane.f32.xlu0 %v810
  %v812 = vpop.xlane.xlu0 %811
  %v813 = vrot.slane %v812, 4
  %v814 = vadd.f32 %v812, %v813
  %v815 = vrot.slane %v814, 2
  %v816 = vadd.f32 %v814, %v815
  %v817 = vrot.slane %v816, 1
  %v818 = vadd.f32 %v816, %v817
  %s819 = vtos %v818
  %v820 = vstv %s819
  %821 = vst [vmem:[%s11] sm:$0xff] %v820
  // Predicated region
  $region42: #{confidnet4layers_forward.1} parent=0 // pred_check
    _
  $region43: #{confidnet4layers_forward.1} parent=0 // pred_check_branch
    %823 = sbr.rel (0) target = $region45
  $region44: #{confidnet4layers_forward.1} parent=0 // pred_region
    _
  $region45: #{confidnet4layers_forward.1} parent=0 // pred_fallthru
    _
  // Predicated region
  $region46: #{confidnet4layers_forward.1} parent=0 // pred_check
    _
  $region47: #{confidnet4layers_forward.1} parent=0 // pred_check_branch
    %825 = sbr.rel (0) target = $region49
  $region48: #{confidnet4layers_forward.1} parent=0 // pred_region
    _
  $region49: #{confidnet4layers_forward.1} parent=0 // pred_fallthru
    _
  // Predicated region
  $region50: #{confidnet4layers_forward.1} parent=0 // pred_check
    _
  $region51: #{confidnet4layers_forward.1} parent=0 // pred_check_branch
    %827 = sbr.rel (0) target = $region53
  $region52: #{confidnet4layers_forward.1} parent=0 // pred_region
    _
  $region53: #{confidnet4layers_forward.1} parent=0 // pred_fallthru
    _
  // Predicated region
  $region54: #{confidnet4layers_forward.1} parent=0 // pred_check
    _
  $region55: #{confidnet4layers_forward.1} parent=0 // pred_check_branch
    %829 = sbr.rel (0) target = $region57
  $region56: #{confidnet4layers_forward.1} parent=0 // pred_region
    _
  $region57: #{confidnet4layers_forward.1} parent=0 // pred_fallthru
    _

</llo_original>
